<compile_context>
chip_gen: v5e
topology: v5e:2x2
jax: 0.10.0
libtpu: 0.0.40
codegen_flags: <defaults>
</compile_context>

<pallas_src>
import jax
import jax.numpy as jnp
from jax.experimental import pallas as pl
from jax.experimental.pallas import tpu as pltpu


_VMEM_BUDGET = 36 * 1024 * 1024   # conservative tile/residency budget (fits v7x)
_VMEM_LIMIT = 48 * 1024 * 1024    # explicit scoped-VMEM limit (<= 64 MiB physical on v7x)


def _round_up(x: int, m: int) -> int:
    return ((x + m - 1) // m) * m


def _pick_tile(dim: int, cap: int, align: int) -> int:
    """Pick a tile (multiple of `align`, <= cap) minimizing padding of `dim`.

    `dim` is already a multiple of `align`. Ties prefer the larger tile.
    """
    cap = max(align, (cap // align) * align)
    cands = {c for c in (1024, 512, 256, 128, 64, 32, 16, 8) if c % align == 0 and c <= cap}
    if dim <= cap:
        cands.add(dim)  # exact fit -> zero tile-multiple padding
    best_t, best_key = None, None
    for t in cands:
        key = (_round_up(dim, t), -t)
        if best_key is None or key < best_key:
            best_key, best_t = key, t
    return best_t


# ---------------- Kernels ----------------


def _encoder_resident_kernel(x_ref, w_ref, b_ref, o_ref):
    # x_ref: (tm, Fp) bf16   w_ref: (Fp, Ep) bf16 (resident)   b_ref: (1, Ep) f32
    acc = jnp.dot(x_ref[...], w_ref[...], preferred_element_type=jnp.float32)
    o_ref[...] = jnp.maximum(acc + b_ref[...], 0.0).astype(o_ref.dtype)


def _encoder_tiled_kernel(x_ref, w_ref, b_ref, o_ref, acc_ref):
    # Fallback: (m, n, k) grid with f32 accumulator resident across k.
    k = pl.program_id(2)
    part = jnp.dot(x_ref[...], w_ref[...], preferred_element_type=jnp.float32)

    @pl.when(k == 0)
    def _():
        acc_ref[...] = part          # no separate zero-fill pass

    @pl.when(k > 0)
    def _():
        acc_ref[...] += part

    @pl.when(k == pl.num_programs(2) - 1)
    def _():
        o_ref[...] = jnp.maximum(acc_ref[...] + b_ref[...], 0.0).astype(o_ref.dtype)


# ---------------- Wrapper ----------------


def mlp_encoder(x, w_t, b, *, compute_dtype=jnp.bfloat16):
    """relu(x @ w_t + b) on TPU via Pallas.

    x   : [B, F]  float32
    w_t : [F, E]  float32 (transpose of nn.Linear weight [E, F]; the one-time
                           transpose/cast belongs at parameter-init time)
    b   : [E]     float32
    """
    B, F = x.shape
    E = w_t.shape[1]
    out_dtype = x.dtype

    in_bytes = jnp.dtype(compute_dtype).itemsize
    sub = 16 if in_bytes == 2 else 8          # sublane packing granularity

    # Layout-minimum padding only (sublane / lane alignment), not tile multiples.
    Bp = _round_up(B, sub)
    Fp = _round_up(F, 128)
    Ep = _round_up(E, 128)

    xc = x.astype(compute_dtype)
    wc = w_t.astype(compute_dtype)
    bc = b.reshape(1, E).astype(jnp.float32)
    if (Bp, Fp) != (B, F):
        xc = jnp.pad(xc, ((0, Bp - B), (0, Fp - F)))
    if (Fp, Ep) != (F, E):
        wc = jnp.pad(wc, ((0, Fp - F), (0, Ep - E)))
    if Ep != E:
        bc = jnp.pad(bc, ((0, 0), (0, Ep - E)))

    # ---- Path 1: whole weight resident in VMEM (no K axis, no accumulator) ----
    w_bytes = 2 * Fp * Ep * in_bytes                 # assume double-buffered (conservative)
    per_row_bytes = 2 * Fp * in_bytes + 2 * Ep * 4   # double-buffered x tile + out tile
    fixed_bytes = w_bytes + 2 * Ep * 4               # resident weight + bias
    tm_cap = (_VMEM_BUDGET - fixed_bytes) // per_row_bytes if fixed_bytes < _VMEM_BUDGET else 0
    tm_cap = (tm_cap // sub) * sub

    if tm_cap >= sub:
        tm = _pick_tile(Bp, min(512, tm_cap), sub)
        grid_m = _round_up(Bp, tm) // tm
        if grid_m == 1 and Bp >= 2 * sub and Bp % (2 * sub) == 0:
            # v7x megacore: give both TensorCores an M block when possible.
            tm = Bp // 2
        Bpp = _round_up(Bp, tm)
        if Bpp != Bp:
            xc = jnp.pad(xc, ((0, Bpp - Bp), (0, 0)))

        out_padded = pl.pallas_call(
            _encoder_resident_kernel,
            out_shape=jax.ShapeDtypeStruct((Bpp, Ep), out_dtype),
            grid_spec=pltpu.PrefetchScalarGridSpec(
                num_scalar_prefetch=0,
                grid=(Bpp // tm,),
                in_specs=[
                    pl.BlockSpec((tm, Fp), lambda i: (i, 0)),   # x tile (streams over M)
                    pl.BlockSpec((Fp, Ep), lambda i: (0, 0)),   # W: DMA'd once, resident
                    pl.BlockSpec((1, Ep), lambda i: (0, 0)),    # bias: resident
                ],
                out_specs=pl.BlockSpec((tm, Ep), lambda i: (i, 0)),
            ),
            compiler_params=pltpu.CompilerParams(
                dimension_semantics=("parallel",),
                vmem_limit_bytes=_VMEM_LIMIT,
            ),
        )(xc, wc, bc)
        return out_padded[:B, :E]

    # ---- Path 2: K-tiled fallback with f32 accumulator (very large weights) ----
    tm = _pick_tile(Bp, 512, sub)
    tn = _pick_tile(Ep, 1024, 128)
    tk = _pick_tile(Fp, 1024, 128)
    Bpp = _round_up(Bp, tm)
    Fpp = _round_up(Fp, tk)
    Epp = _round_up(Ep, tn)
    if (Bpp, Fpp) != (Bp, Fp):
        xc = jnp.pad(xc, ((0, Bpp - Bp), (0, Fpp - Fp)))
    if (Fpp, Epp) != (Fp, Ep):
        wc = jnp.pad(wc, ((0, Fpp - Fp), (0, Epp - Ep)))
    if Epp != Ep:
        bc = jnp.pad(bc, ((0, 0), (0, Epp - Ep)))

    out_padded = pl.pallas_call(
        _encoder_tiled_kernel,
        out_shape=jax.ShapeDtypeStruct((Bpp, Epp), out_dtype),
        grid_spec=pltpu.PrefetchScalarGridSpec(
            num_scalar_prefetch=0,
            grid=(Bpp // tm, Epp // tn, Fpp // tk),
            in_specs=[
                pl.BlockSpec((tm, tk), lambda i, j, k: (i, k)),
                pl.BlockSpec((tk, tn), lambda i, j, k: (k, j)),
                pl.BlockSpec((1, tn), lambda i, j, k: (0, j)),   # bias resident across i, k
            ],
            out_specs=pl.BlockSpec((tm, tn), lambda i, j, k: (i, j)),
            scratch_shapes=[pltpu.VMEM((tm, tn), jnp.float32)],
        ),
        compiler_params=pltpu.CompilerParams(
            dimension_semantics=("parallel", "parallel", "arbitrary"),
            vmem_limit_bytes=_VMEM_LIMIT,
        ),
    )(xc, wc, bc)
    return out_padded[:B, :E]


if __name__ == "__main__":
    key = jax.random.PRNGKey(0)
    k_x, k_w, k_b = jax.random.split(key, 3)

    batch = 8
    input_features = 32
    embedding_dim = 128

    # Deterministic synthetic parameters (nn.Linear layout: weight [E, F], bias [E]).
    x = jax.random.normal(k_x, (batch, input_features), dtype=jnp.float32)
    w = jax.random.normal(k_w, (embedding_dim, input_features), dtype=jnp.float32) * 0.1
    b = jax.random.normal(k_b, (embedding_dim,), dtype=jnp.float32) * 0.1

    # One-time transpose at "parameter init" time (not in the hot path).
    w_t = jnp.asarray(w.T)  # [F, E]

    out = jax.block_until_ready(mlp_encoder(x, w_t, b))

    # Reference with the same bf16 input quantization and f32 accumulation.
    xq = x.astype(jnp.bfloat16).astype(jnp.float32)
    wq = w_t.astype(jnp.bfloat16).astype(jnp.float32)
    ref = jnp.maximum(xq @ wq + b, 0.0)

    assert out.shape == (batch, embedding_dim)
    assert jnp.allclose(out, ref, atol=1e-2, rtol=1e-2), float(jnp.max(jnp.abs(out - ref)))

    print("KERNEL_OK")
</pallas_src>

<mosaic_0001>
module attributes {stable_mosaic.version = 11 : i64} {
  func.func @_encoder_resident_kernel(%arg0: i32, %arg1: memref<16x128xbf16, #tpu.memory_space<vmem>>, %arg2: memref<128x128xbf16, #tpu.memory_space<vmem>>, %arg3: memref<1x128xf32, #tpu.memory_space<vmem>>, %arg4: memref<16x128xf32, #tpu.memory_space<vmem>>) attributes {dimension_semantics = [#tpu.dimension_semantics<parallel>], iteration_bounds = array<i64: 1>, scalar_prefetch = 0 : i64, scratch_operands = 0 : i64, tpu.core_type = #tpu.core_type<tc>, window_params = [{transform_indices = @transform_0, window_bounds = array<i64: 16, 128>}, {pipeline_mode = #tpu.pipeline_mode<synchronous>, transform_indices = @transform_1, window_bounds = array<i64: 128, 128>}, {pipeline_mode = #tpu.pipeline_mode<synchronous>, transform_indices = @transform_2, window_bounds = array<i64: 1, 128>}, {transform_indices = @transform_3, window_bounds = array<i64: 16, 128>}]} {
    %c0 = arith.constant 0 : index
    %c0_0 = arith.constant 0 : index
    %0 = vector.load %arg1[%c0, %c0_0] : memref<16x128xbf16, #tpu.memory_space<vmem>>, vector<16x128xbf16>
    %c0_1 = arith.constant 0 : index
    %c0_2 = arith.constant 0 : index
    %1 = vector.load %arg2[%c0_1, %c0_2] : memref<128x128xbf16, #tpu.memory_space<vmem>>, vector<128x128xbf16>
    %cst = arith.constant dense<0.000000e+00> : vector<16x128xf32>
    %2 = tpu.matmul %0, %1, %cst {dimension_numbers = #tpu.dot_dimension_numbers<[1], [0], [0], [1], [0, 0, 1, 1], [], []>} : vector<16x128xbf16>, vector<128x128xbf16>, vector<16x128xf32> -> vector<16x128xf32>
    %c0_3 = arith.constant 0 : index
    %c0_4 = arith.constant 0 : index
    %3 = vector.load %arg3[%c0_3, %c0_4] : memref<1x128xf32, #tpu.memory_space<vmem>>, vector<1x128xf32>
    %4 = vector.broadcast %3 : vector<1x128xf32> to vector<16x128xf32>
    %5 = arith.addf %2, %4 : vector<16x128xf32>
    %cst_5 = arith.constant 0.000000e+00 : f32
    %6 = vector.broadcast %cst_5 : f32 to vector<16x128xf32>
    %7 = arith.maximumf %5, %6 : vector<16x128xf32>
    %c0_6 = arith.constant 0 : index
    %c0_7 = arith.constant 0 : index
    %8 = vector.load %arg4[%c0_6, %c0_7] : memref<16x128xf32, #tpu.memory_space<vmem>>, vector<16x128xf32>
    tpu.vector_store %arg4[%c0_6, %c0_7], %7 {strides = array<i32>} : memref<16x128xf32, #tpu.memory_space<vmem>>, vector<16x128xf32>,
    return
  }
  func.func @transform_0(%arg0: i32) -> (i32, i32) {
    %c0_i32 = arith.constant 0 : i32
    %c0_i32_0 = arith.constant 0 : i32
    return %arg0, %c0_i32 : i32, i32
  }
  func.func @transform_1(%arg0: i32) -> (i32, i32) {
    %c0_i32 = arith.constant 0 : i32
    %c0_i32_0 = arith.constant 0 : i32
    %c0_i32_1 = arith.constant 0 : i32
    return %c0_i32, %c0_i32_0 : i32, i32
  }
  func.func @transform_2(%arg0: i32) -> (i32, i32) {
    %c0_i32 = arith.constant 0 : i32
    %c0_i32_0 = arith.constant 0 : i32
    %c0_i32_1 = arith.constant 0 : i32
    return %c0_i32, %c0_i32_0 : i32, i32
  }
  func.func @transform_3(%arg0: i32) -> (i32, i32) {
    %c0_i32 = arith.constant 0 : i32
    %c0_i32_0 = arith.constant 0 : i32
    return %arg0, %c0_i32 : i32, i32
  }
}

</mosaic_0001>

<llo_original>
// kernel: tpu_custom_call.1
$region0: #{tpu_custom_call.1}
  #allocation0 [shape = 'u32[]', space=smem, size = 0x4, offset = 0x4, fixed_abs, tag = 'smem constant byte address 0x4 - core index']
  #allocation1 [shape = 'u32[72,128]{1,0:T(1,128)}', space=vmem, size = 0x9000, scoped, tag = 'internal scratch']
  %s0 = inlined_call_operand.hbm [shape: bf16[16,128], index: 0, kind: input, shape index: {}]
  %s1 = inlined_call_operand.hbm [shape: bf16[128,128], index: 1, kind: input, shape index: {}]
  %s2 = inlined_call_operand.vmem [shape: f32[1,128], index: 2, kind: input, shape index: {}]
  %s3 = inlined_call_operand.hbm [shape: f32[16,128], index: 3, kind: output, shape index: {}]
  %s4 = sld [smem:[#allocation0]]
  $region30: #{tpu_custom_call.1} parent=0
    _
  %s6 = ssub.s32 1, %s4
  %s7 = scalar_select 0, %s6, %s4
  $region1: #{tpu_custom_call.1} parent=0
    #allocation2 [shape = 'u8[4096]{0}', space=vmem, size = 0x1000, scoped, tag = 'input window, operand 0, single buffered']
    #allocation3 [shape = 's32[1]{0}', space=sflag, size = 0x4, scoped, tag = 'scoped memory for tpu_custom_call.1']
    #allocation4 [shape = 's32[1]{0}', space=sflag, size = 0x4, scoped, tag = 'scoped memory for tpu_custom_call.1']
    #allocation5 [shape = 'u8[32768]{0}', space=vmem, size = 0x8000, scoped, tag = 'input window, operand 1, single buffered']
    #allocation6 [shape = 's32[1]{0}', space=sflag, size = 0x4, scoped, tag = 'scoped memory for tpu_custom_call.1']
    #allocation7 [shape = 'u8[8192]{0}', space=vmem, size = 0x2000, scoped, tag = 'output window, operand 0, single buffered']
    %8 = vsyncpa [#allocation3], 0
    %9 = vsyncpa [#allocation6], 0
    %10 = vsyncpa [#allocation4], 0
    // Predicated region
    $region2: #{tpu_custom_call.1} parent=1 // pred_check
      _
    $region3: #{tpu_custom_call.1} parent=1 // pred_check_branch
      %12 = sbr.rel (0) target = $region5
    $region4: #{tpu_custom_call.1} parent=1 // pred_region
      %14 = vsyncadd [#allocation3], 0
      %s15 = sshll.u32 %s0, 4
      %s16 = int_to_ptr.hbm [resolvable:$true] %s15
      %s17 = sshll.u32 [#allocation2], 4
      %s18 = int_to_ptr.vmem [resolvable:$true] %s17
      %23 = dma.hbm_to_vmem [thread:$0]  %s16, 128, %s18, [#allocation3], 64, 64, 4
    $region5: #{tpu_custom_call.1} parent=1 // pred_fallthru
      _
    // Predicated region
    $region6: #{tpu_custom_call.1} parent=1 // pred_check
      _
    $region7: #{tpu_custom_call.1} parent=1 // pred_check_branch
      %25 = sbr.rel (0) target = $region9
    $region8: #{tpu_custom_call.1} parent=1 // pred_region
      %27 = vsyncadd [#allocation6], 0
      %s28 = sshll.u32 %s1, 4
      %s29 = int_to_ptr.hbm [resolvable:$true] %s28
      %s30 = sshll.u32 [#allocation5], 4
      %s31 = int_to_ptr.vmem [resolvable:$true] %s30
      %36 = dma.hbm_to_vmem [thread:$0]  %s29, 1024, %s31, [#allocation6], 64, 64, 4
    $region9: #{tpu_custom_call.1} parent=1 // pred_fallthru
      _
    // Predicated region
    $region10: #{tpu_custom_call.1} parent=1 // pred_check
      _
    $region11: #{tpu_custom_call.1} parent=1 // pred_check_branch
      %38 = sbr.rel (0) target = $region13
    $region12: #{tpu_custom_call.1} parent=1 // pred_region
      _
    $region13: #{tpu_custom_call.1} parent=1 // pred_fallthru
      _
    // Predicated region
    $region14: #{tpu_custom_call.1} parent=1 // pred_check
      _
    $region15: #{tpu_custom_call.1} parent=1 // pred_check_branch
      %40 = sbr.rel (0) target = $region17
    $region16: #{tpu_custom_call.1} parent=1 // pred_region
      %42 = dma.done [#allocation3], 128
    $region17: #{tpu_custom_call.1} parent=1 // pred_fallthru
      _
    // Predicated region
    $region18: #{tpu_custom_call.1} parent=1 // pred_check
      _
    $region19: #{tpu_custom_call.1} parent=1 // pred_check_branch
      %44 = sbr.rel (0) target = $region21
    $region20: #{tpu_custom_call.1} parent=1 // pred_region
      %46 = dma.done [#allocation6], 1024
    $region21: #{tpu_custom_call.1} parent=1 // pred_fallthru
      _
    %v47 = vld [vmem:[#allocation2] sm:$0xf]
    %v48 = vld [vmem:[#allocation2 + $0x4] sm:$0xf]
    %v49 = vld [vmem:[#allocation5] sm:$0xf]
    %v50 = vld [vmem:[#allocation5 + $0x4] sm:$0xf]
    %v51 = vld [vmem:[#allocation5 + $0x8] sm:$0xf]
    %v52 = vld [vmem:[#allocation5 + $0xc] sm:$0xf]
    %v53 = vld [vmem:[#allocation5 + $0x10] sm:$0xf]
    %v54 = vld [vmem:[#allocation5 + $0x14] sm:$0xf]
    %v55 = vld [vmem:[#allocation5 + $0x18] sm:$0xf]
    %v56 = vld [vmem:[#allocation5 + $0x1c] sm:$0xf]
    %v57 = vld [vmem:[#allocation5 + $0x20] sm:$0xf]
    %v58 = vld [vmem:[#allocation5 + $0x24] sm:$0xf]
    %v59 = vld [vmem:[#allocation5 + $0x28] sm:$0xf]
    %v60 = vld [vmem:[#allocation5 + $0x2c] sm:$0xf]
    %v61 = vld [vmem:[#allocation5 + $0x30] sm:$0xf]
    %v62 = vld [vmem:[#allocation5 + $0x34] sm:$0xf]
    %v63 = vld [vmem:[#allocation5 + $0x38] sm:$0xf]
    %v64 = vld [vmem:[#allocation5 + $0x3c] sm:$0xf]
    %v65 = vld [vmem:[%s2] sm:$0x1]
    %v67 = vperm.slane %v65, 0
    %v71 = vunpack.c.l.b16 %v47
    %v72 = vunpack.c.l.b16 %v48
    %v73 = vpack.c.b16 %v72, %v71
    %v91 = vunpack.c.l.b16 %v49
    %v92 = vunpack.c.l.b16 %v50
    %v93 = vunpack.c.l.b16 %v51
    %v94 = vunpack.c.l.b16 %v52
    %v95 = vunpack.c.l.b16 %v53
    %v96 = vunpack.c.l.b16 %v54
    %v97 = vunpack.c.l.b16 %v55
    %v98 = vunpack.c.l.b16 %v56
    %v99 = vunpack.c.l.b16 %v57
    %v100 = vunpack.c.l.b16 %v58
    %v101 = vunpack.c.l.b16 %v59
    %v102 = vunpack.c.l.b16 %v60
    %v103 = vunpack.c.l.b16 %v61
    %v104 = vunpack.c.l.b16 %v62
    %v105 = vunpack.c.l.b16 %v63
    %v106 = vunpack.c.l.b16 %v64
    %v107 = vpack.c.b16 %v92, %v91
    %v108 = vpack.c.b16 %v94, %v93
    %v109 = vpack.c.b16 %v96, %v95
    %v110 = vpack.c.b16 %v98, %v97
    %v111 = vpack.c.b16 %v100, %v99
    %v112 = vpack.c.b16 %v102, %v101
    %v113 = vpack.c.b16 %v104, %v103
    %v114 = vpack.c.b16 %v106, %v105
    %123 = vmatpush.bf16.msra.mxu0 %v114
    %124 = vmatpush.bf16.msra.mxu0 %v113
    %125 = vmatpush.bf16.msra.mxu0 %v112
    %126 = vmatpush.bf16.msra.mxu0 %v111
    %127 = vmatpush.bf16.msra.mxu0 %v110
    %128 = vmatpush.bf16.msra.mxu0 %v109
    %129 = vmatpush.bf16.msra.mxu0 %v108
    %130 = vmatpush.bf16.msra.mxu0 %v107
    %131 = vmatmul.bf16.gmra.mxu0 %v73
    %v132 = vpop.f32.mrf.mxu0
    %v133 = vadd.f32 %v67, %v132
    %v134 = vpop.f32.mrf.mxu0
    %v135 = vadd.f32 %v67, %v134
    %136 = vdwg.mxu0
    %v137 = vmax.f32 %v133, 0.0
    %v138 = vmax.f32 %v135, 0.0
    %139 = vst [vmem:[#allocation7] sm:$0xff] %v137
    %140 = vst [vmem:[#allocation7 + $0x8] sm:$0xff] %v138
    // Predicated region
    $region22: #{tpu_custom_call.1} parent=1 // pred_check
      _
    $region23: #{tpu_custom_call.1} parent=1 // pred_check_branch
      %142 = sbr.rel (0) target = $region25
    $region24: #{tpu_custom_call.1} parent=1 // pred_region
      %144 = vsyncadd [#allocation4], 0
      %s145 = sshll.u32 [#allocation7], 4
      %s146 = int_to_ptr.vmem [resolvable:$true] %s145
      %s147 = sshll.u32 %s3, 4
      %s148 = int_to_ptr.hbm [resolvable:$true] %s147
      %153 = dma.vmem_to_hbm [thread:$0]  %s146, 256, %s148, [#allocation4], 128, 128, 8
    $region25: #{tpu_custom_call.1} parent=1 // pred_fallthru
      _
    // Predicated region
    $region26: #{tpu_custom_call.1} parent=1 // pred_check
      _
    $region27: #{tpu_custom_call.1} parent=1 // pred_check_branch
      %155 = sbr.rel (0) target = $region29
    $region28: #{tpu_custom_call.1} parent=1 // pred_region
      %157 = dma.done [#allocation4], 256
    $region29: #{tpu_custom_call.1} parent=1 // pred_fallthru
      _
    %158 = vsyncpa [#allocation3], 1
    %159 = vsyncpa [#allocation6], 1
    %160 = vsyncpa [#allocation4], 1

</llo_original>
